<compile_context>
chip_gen: v7x
topology: tpu7x:2x2x1
jax: 0.10.0
libtpu: 0.0.40
codegen_flags: <defaults>
</compile_context>

<pallas_src>
import jax
import jax.numpy as jnp
from jax.experimental import pallas as pl
from jax.experimental.pallas import tpu as pltpu


def mlp_kernel(x_ref, w1_ref, p_ref, b2_ref, o_ref):
    # Layer 1: (TB, D) @ (D, H) on the MXU; bias + ReLU on the VPU.
    h = jnp.dot(x_ref[...], w1_ref[...], preferred_element_type=jnp.float32)
    h = jnp.maximum(h + p_ref[0:1, :], 0.0)                  # b1 broadcast (1, H)
    # Layer 2: contract H; (1, H) x (TB, H)^T -> (1, TB), already lane-dense.
    z = jnp.einsum("oh,bh->ob", p_ref[1:2, :], h,
                   preferred_element_type=jnp.float32)
    z = z + b2_ref[0, 0]                                     # scalar bias from SMEM
    o_ref[...] = jax.nn.sigmoid(z).astype(o_ref.dtype)       # EUP logistic


def simple_mlp_forward(x, w1, b1, w2, b2, *, block_b=512):
    """y = sigmoid(relu(x @ w1 + b1) @ w2 + b2).

    x: (B, D) f32; w1: (D, H); b1: (1, H) or (H,); w2: (H, 1) or (H,);
    b2: (1, 1) or scalar.  Returns (B, 1) f32, matching the PyTorch module.
    """
    B, D = x.shape
    H = w1.shape[1]

    # Batch tile: multiple of 128 so the lane-dense (1, TB) output block is legal
    # (and >= 8 sublanes for the (TB, D) x block).  Pad B up to a tile multiple.
    tb = min(block_b, pl.next_power_of_2(max(B, 128)))
    tb = max(128, (tb // 128) * 128)
    b_pad = pl.cdiv(B, tb) * tb
    if b_pad != B:
        x = jnp.pad(x, ((0, b_pad - B), (0, 0)))
    n_blocks = b_pad // tb

    # Pack the tiny parameters: row 0 = b1, row 1 = w2 as a row.  b2 -> SMEM scalar.
    params = jnp.concatenate(
        [jnp.reshape(b1, (1, H)).astype(jnp.float32),
         jnp.reshape(w2, (1, H)).astype(jnp.float32)], axis=0)   # (2, H)
    b2_s = jnp.reshape(b2, (1, 1)).astype(jnp.float32)

    out_row = pl.pallas_call(
        mlp_kernel,
        out_shape=jax.ShapeDtypeStruct((1, b_pad), jnp.float32),
        grid=(n_blocks,),
        in_specs=[
            pl.BlockSpec((tb, D), lambda i: (i, 0)),              # x batch tile
            pl.BlockSpec((D, H), lambda i: (0, 0)),               # W1, resident
            pl.BlockSpec((2, H), lambda i: (0, 0)),               # packed b1 / w2
            pl.BlockSpec(memory_space=pltpu.MemorySpace.SMEM),    # b2 scalar
        ],
        out_specs=pl.BlockSpec((1, tb), lambda i: (0, i)),        # lane-dense out
        compiler_params=pltpu.CompilerParams(
            dimension_semantics=("parallel",)),                   # megacore on v7x
    )(x, w1, params, b2_s)

    return out_row.reshape(b_pad, 1)[:B]


def init_params(key, input_dim, hidden_dim=16):
    """Deterministic init mirroring nn.Linear's uniform(-1/sqrt(fan_in), 1/sqrt(fan_in))."""
    k1, k2, k3, k4 = jax.random.split(key, 4)
    bound1 = 1.0 / jnp.sqrt(input_dim)
    bound2 = 1.0 / jnp.sqrt(hidden_dim)
    w1 = jax.random.uniform(k1, (input_dim, hidden_dim), jnp.float32, -bound1, bound1)
    b1 = jax.random.uniform(k2, (1, hidden_dim), jnp.float32, -bound1, bound1)
    w2 = jax.random.uniform(k3, (hidden_dim, 1), jnp.float32, -bound2, bound2)
    b2 = jax.random.uniform(k4, (1, 1), jnp.float32, -bound2, bound2)
    return w1, b1, w2, b2


if __name__ == "__main__":
    key = jax.random.PRNGKey(0)
    kx, kp = jax.random.split(key)

    batch, input_dim, hidden_dim = 256, 32, 16
    x = jax.random.normal(kx, (batch, input_dim), jnp.float32)
    w1, b1, w2, b2 = init_params(kp, input_dim, hidden_dim)

    # block_b=128 -> grid=(2,): exercises the batch pipeline + parallel axis.
    out = simple_mlp_forward(x, w1, b1, w2, b2, block_b=128)
    out = jax.block_until_ready(out)

    # Pure-JAX reference check.
    h_ref = jnp.maximum(x @ w1 + b1, 0.0)
    ref = jax.nn.sigmoid(h_ref @ w2 + b2)
    assert out.shape == (batch, 1)
    assert jnp.allclose(out, ref, atol=1e-5, rtol=1e-5)

    print("KERNEL_OK")
</pallas_src>

<mosaic_0001>
module attributes {stable_mosaic.version = 11 : i64} {
  func.func @mlp_kernel(%arg0: i32, %arg1: memref<128x32xf32, #tpu.memory_space<vmem>>, %arg2: memref<32x16xf32, #tpu.memory_space<vmem>>, %arg3: memref<2x16xf32, #tpu.memory_space<vmem>>, %arg4: memref<1x1xf32, #tpu.memory_space<smem>>, %arg5: memref<1x128xf32, #tpu.memory_space<vmem>>) attributes {dimension_semantics = [#tpu.dimension_semantics<parallel>], iteration_bounds = array<i64: 2>, scalar_prefetch = 0 : i64, scratch_operands = 0 : i64, tpu.core_type = #tpu.core_type<tc>, window_params = [{transform_indices = @transform_0, window_bounds = array<i64: 128, 32>}, {pipeline_mode = #tpu.pipeline_mode<synchronous>, transform_indices = @transform_1, window_bounds = array<i64: 32, 16>}, {pipeline_mode = #tpu.pipeline_mode<synchronous>, transform_indices = @transform_2, window_bounds = array<i64: 2, 16>}, {transform_indices = @transform_3, window_bounds = array<i64: 1, 1>}, {transform_indices = @transform_4, window_bounds = array<i64: 1, 128>}]} {
    %c0 = arith.constant 0 : index
    %c0_0 = arith.constant 0 : index
    %0 = vector.load %arg1[%c0, %c0_0] : memref<128x32xf32, #tpu.memory_space<vmem>>, vector<128x32xf32>
    %c0_1 = arith.constant 0 : index
    %c0_2 = arith.constant 0 : index
    %1 = vector.load %arg2[%c0_1, %c0_2] : memref<32x16xf32, #tpu.memory_space<vmem>>, vector<32x16xf32>
    %cst = arith.constant dense<0.000000e+00> : vector<128x16xf32>
    %2 = tpu.matmul %0, %1, %cst {dimension_numbers = #tpu.dot_dimension_numbers<[1], [0], [0], [1], [0, 0, 1, 1], [], []>} : vector<128x32xf32>, vector<32x16xf32>, vector<128x16xf32> -> vector<128x16xf32>
    %c0_3 = arith.constant 0 : index
    %c0_4 = arith.constant 0 : index
    %3 = vector.load %arg3[%c0_3, %c0_4] : memref<2x16xf32, #tpu.memory_space<vmem>>, vector<1x16xf32>
    %4 = vector.broadcast %3 : vector<1x16xf32> to vector<128x16xf32>
    %5 = arith.addf %2, %4 : vector<128x16xf32>
    %cst_5 = arith.constant 0.000000e+00 : f32
    %6 = vector.broadcast %cst_5 : f32 to vector<128x16xf32>
    %7 = arith.maximumf %5, %6 : vector<128x16xf32>
    %c1 = arith.constant 1 : index
    %c0_6 = arith.constant 0 : index
    %8 = vector.load %arg3[%c1, %c0_6] : memref<2x16xf32, #tpu.memory_space<vmem>>, vector<1x16xf32>
    "tpu.trace_start"() <{level = 10 : i32, message = "oh,bh->ob"}> : () -> ()
    %cst_7 = arith.constant dense<0.000000e+00> : vector<1x128xf32>
    %9 = tpu.matmul %8, %7, %cst_7 {dimension_numbers = #tpu.dot_dimension_numbers<[1], [1], [0], [0], [0, 0, 1, 0], [], []>} : vector<1x16xf32>, vector<128x16xf32>, vector<1x128xf32> -> vector<1x128xf32>
    "tpu.trace_stop"() : () -> ()
    %c0_8 = arith.constant 0 : index
    %c0_9 = arith.constant 0 : index
    %10 = memref.load %arg4[%c0_8, %c0_9] : memref<1x1xf32, #tpu.memory_space<smem>>
    %11 = vector.broadcast %10 : f32 to vector<1x128xf32>
    %12 = arith.addf %9, %11 : vector<1x128xf32>
    %13 = arith.negf %12 : vector<1x128xf32>
    %14 = math.exp %13 : vector<1x128xf32>
    %cst_10 = arith.constant 1.000000e+00 : f32
    %15 = vector.broadcast %cst_10 : f32 to vector<1x128xf32>
    %16 = arith.addf %15, %14 : vector<1x128xf32>
    %17 = arith.divf %15, %16 : vector<1x128xf32>
    %c0_11 = arith.constant 0 : index
    %c0_12 = arith.constant 0 : index
    %18 = vector.load %arg5[%c0_11, %c0_12] : memref<1x128xf32, #tpu.memory_space<vmem>>, vector<1x128xf32>
    tpu.vector_store %arg5[%c0_11, %c0_12], %17 {strides = array<i32>} : memref<1x128xf32, #tpu.memory_space<vmem>>, vector<1x128xf32>,
    return
  }
  func.func @transform_0(%arg0: i32) -> (i32, i32) {
    %c0_i32 = arith.constant 0 : i32
    %c0_i32_0 = arith.constant 0 : i32
    return %arg0, %c0_i32 : i32, i32
  }
  func.func @transform_1(%arg0: i32) -> (i32, i32) {
    %c0_i32 = arith.constant 0 : i32
    %c0_i32_0 = arith.constant 0 : i32
    %c0_i32_1 = arith.constant 0 : i32
    return %c0_i32, %c0_i32_0 : i32, i32
  }
  func.func @transform_2(%arg0: i32) -> (i32, i32) {
    %c0_i32 = arith.constant 0 : i32
    %c0_i32_0 = arith.constant 0 : i32
    %c0_i32_1 = arith.constant 0 : i32
    return %c0_i32, %c0_i32_0 : i32, i32
  }
  func.func @transform_3(%arg0: i32) -> (i32, i32) {
    %c0_i32 = arith.constant 0 : i32
    %c0_i32_0 = arith.constant 0 : i32
    %c0_i32_1 = arith.constant 0 : i32
    return %c0_i32, %c0_i32_0 : i32, i32
  }
  func.func @transform_4(%arg0: i32) -> (i32, i32) {
    %c0_i32 = arith.constant 0 : i32
    %c0_i32_0 = arith.constant 0 : i32
    return %c0_i32, %arg0 : i32, i32
  }
}

</mosaic_0001>

<llo_original>
// kernel: tpu_custom_call.1
$region0: #{tpu_custom_call.1}
  #allocation0 [shape = 'u32[]', space=smem, size = 0x4, offset = 0x4, fixed_abs, tag = 'smem constant byte address 0x4 - core index']
  #allocation1 [shape = 'u32[144,128]{1,0:T(1,128)}', space=vmem, size = 0x12000, scoped, tag = 'internal scratch']
  #allocation2 [shape = 'f32[1,1]{1,0:T(1,128)S(6)}', space=smem, size = 0x200, scoped, tag = 'scoped memory for tpu_custom_call.1']
  %s0 = inlined_call_operand.vmem [shape: f32[256,32], index: 0, kind: input, shape index: {}]
  %s1 = inlined_call_operand.vmem [shape: f32[32,16], index: 1, kind: input, shape index: {}]
  %s2 = inlined_call_operand.vmem [shape: f32[2,16], index: 2, kind: input, shape index: {}]
  %s3 = inlined_call_operand.<no memory space> [shape: f32[1,1], index: 3, kind: input, shape index: {}]
  %s4 = inlined_call_operand.hbm [shape: f32[1,256], index: 4, kind: output, shape index: {}]
  %s5 = sld [smem:[#allocation0]]
  $region49: #{tpu_custom_call.1} parent=0
    _
  %s7 = ssub.s32 1, %s5
  %s8 = scalar_select 0, %s7, %s5
  %9 = sst [smem:[#allocation2]] %s3
  $region1: #{tpu_custom_call.1} parent=0
    #allocation3 [shape = 'u8[1024]{0}', space=vmem, size = 0x400, scoped, tag = 'output window, operand 0']
    #allocation4 [shape = 's32[2]{0}', space=sflag, size = 0x8, scoped, tag = 'scoped memory for tpu_custom_call.1']
    %10 = vsyncpa [#allocation4], 0
    %s11 = scalar_lea.sflag [#allocation4], 1
    %12 = vsyncpa %s11, 0
    loop: start=0, step=1, limit=4
    $region2: #{tpu_custom_call.1} parent=1 // loop_pre_header
      _
    $region3: #{tpu_custom_call.1} parent=1 // loop_header
      %s14 = sphi 0, %s18
      %p15 = scmp.ge.s32.totalorder %s14, 4
      %s24 = sphi 0, %s26
      %s27 = sphi 0, %s24
      %s28 = sphi 0, %s27
      %s44 = sphi 0, %s28
      %s48 = sphi 0, %s48
      %s50 = sphi 0, %s48
      %s51 = sphi 0, %s50
      %s65 = sphi 0, %s51
      %s69 = sphi 0, %s69
      %s71 = sphi 0, %s69
      %s72 = sphi 0, %s71
      %s86 = sphi 0, %s72
      %s90 = sphi 0, %s90
      %s92 = sphi 0, %s90
      %s93 = sphi 0, %s92
      %s107 = sphi 0, %s93
      %s113 = sphi 0, %s115
      %s116 = sphi 0, %s113
      %s117 = sphi 0, %s116
      %s133 = sphi 0, %s117
    $region4: #{tpu_custom_call.1} parent=1 // loop_header_branch
      %17 = sbr.rel (%p15) target = $region8
    $region5: #{tpu_custom_call.1} parent=1 // loop_body
      %s19 = ssub.s32 %s14, 1
      %s20 = ssub.s32 %s14, 2
      %s21 = sadd.s32 %s14, 1
      %s22 = ssub.s32 %s14, %s21
      %p23 = scmp.eq.s32.totalorder %s22, 0
      %s25 = sadd.s32 %s24, 1
      %s26 = scalar_select %p23, %s24, %s25
      %p29 = pneg %p23
      %p30 = scmp.eq.s32.totalorder %s14, 1
      %p31 = por %p29, %p30
      %p32 = scmp.ne.s32.totalorder %s24, %s27
      %p33 = scmp.eq.s32.totalorder %s14, 0
      %p34 = por %p32, %p33
      %p35 = scmp.ne.s32.totalorder %s24, %s27
      %p36 = scmp.eq.s32.totalorder %s19, 1
      %p37 = por %p35, %p36
      %p38 = scmp.ne.s32.totalorder %s27, %s28
      %p39 = scmp.eq.s32.totalorder %s19, 0
      %p40 = por %p38, %p39
      %p41 = scmp.ne.s32.totalorder %s27, %s28
      %p42 = scmp.eq.s32.totalorder %s20, 1
      %p43 = por %p41, %p42
      %p45 = scmp.ne.s32.totalorder %s28, %s44
      %p46 = scmp.eq.s32.totalorder %s20, 0
      %p47 = por %p45, %p46
      %s49 = sadd.s32 %s48, 1
      %p52 = scmp.eq.s32.totalorder %s14, 1
      %p53 = scmp.ne.s32.totalorder %s48, %s50
      %p54 = scmp.eq.s32.totalorder %s14, 0
      %p55 = por %p53, %p54
      %p56 = scmp.ne.s32.totalorder %s48, %s50
      %p57 = scmp.eq.s32.totalorder %s19, 1
      %p58 = por %p56, %p57
      %p59 = scmp.ne.s32.totalorder %s50, %s51
      %p60 = scmp.eq.s32.totalorder %s19, 0
      %p61 = por %p59, %p60
      %p62 = scmp.ne.s32.totalorder %s50, %s51
      %p63 = scmp.eq.s32.totalorder %s20, 1
      %p64 = por %p62, %p63
      %p66 = scmp.ne.s32.totalorder %s51, %s65
      %p67 = scmp.eq.s32.totalorder %s20, 0
      %p68 = por %p66, %p67
      %s70 = sadd.s32 %s69, 1
      %p73 = scmp.eq.s32.totalorder %s14, 1
      %p74 = scmp.ne.s32.totalorder %s69, %s71
      %p75 = scmp.eq.s32.totalorder %s14, 0
      %p76 = por %p74, %p75
      %p77 = scmp.ne.s32.totalorder %s69, %s71
      %p78 = scmp.eq.s32.totalorder %s19, 1
      %p79 = por %p77, %p78
      %p80 = scmp.ne.s32.totalorder %s71, %s72
      %p81 = scmp.eq.s32.totalorder %s19, 0
      %p82 = por %p80, %p81
      %p83 = scmp.ne.s32.totalorder %s71, %s72
      %p84 = scmp.eq.s32.totalorder %s20, 1
      %p85 = por %p83, %p84
      %p87 = scmp.ne.s32.totalorder %s72, %s86
      %p88 = scmp.eq.s32.totalorder %s20, 0
      %p89 = por %p87, %p88
      %s91 = sadd.s32 %s90, 1
      %p94 = scmp.eq.s32.totalorder %s14, 1
      %p95 = scmp.ne.s32.totalorder %s90, %s92
      %p96 = scmp.eq.s32.totalorder %s14, 0
      %p97 = por %p95, %p96
      %p98 = scmp.ne.s32.totalorder %s90, %s92
      %p99 = scmp.eq.s32.totalorder %s19, 1
      %p100 = por %p98, %p99
      %p101 = scmp.ne.s32.totalorder %s92, %s93
      %p102 = scmp.eq.s32.totalorder %s19, 0
      %p103 = por %p101, %p102
      %p104 = scmp.ne.s32.totalorder %s92, %s93
      %p105 = scmp.eq.s32.totalorder %s20, 1
      %p106 = por %p104, %p105
      %p108 = scmp.ne.s32.totalorder %s93, %s107
      %p109 = scmp.eq.s32.totalorder %s20, 0
      %p110 = por %p108, %p109
      %s111 = ssub.s32 %s14, %s21
      %p112 = scmp.eq.s32.totalorder %s111, 0
      %s114 = sadd.s32 %s113, 1
      %s115 = scalar_select %p112, %s113, %s114
      %p118 = pneg %p112
      %p119 = scmp.eq.s32.totalorder %s14, 1
      %p120 = por %p118, %p119
      %p121 = scmp.ne.s32.totalorder %s113, %s116
      %p122 = scmp.eq.s32.totalorder %s14, 0
      %p123 = por %p121, %p122
      %p124 = scmp.ne.s32.totalorder %s113, %s116
      %p125 = scmp.eq.s32.totalorder %s19, 1
      %p126 = por %p124, %p125
      %p127 = scmp.ne.s32.totalorder %s116, %s117
      %p128 = scmp.eq.s32.totalorder %s19, 0
      %p129 = por %p127, %p128
      %p130 = scmp.ne.s32.totalorder %s116, %s117
      %p131 = scmp.eq.s32.totalorder %s20, 1
      %p132 = por %p130, %p131
      %p134 = scmp.ne.s32.totalorder %s117, %s133
      %p135 = scmp.eq.s32.totalorder %s20, 0
      %p136 = por %p134, %p135
      %p137 = scmp.le.s32.totalorder 1, %s14
      %p138 = scmp.lt.s32.totalorder %s14, 3
      %p139 = pnand %p137, %p138
      %p140 = pneg %p139
      // Predicated region
      $region9: #{tpu_custom_call.1} parent=5 // pred_check
        _
      $region10: #{tpu_custom_call.1} parent=5 // pred_check_branch
        %142 = sbr.rel (%p139) target = $region12
      $region11: #{tpu_custom_call.1} parent=5 // pred_region
        %s143 = ssub.s32 %s14, 1
        // Predicated region
        $region13: #{tpu_custom_call.1} parent=11 // pred_check
          %p144 = pneg %p61
        $region14: #{tpu_custom_call.1} parent=11 // pred_check_branch
          %146 = sbr.rel (%p144) target = $region16
        $region15: #{tpu_custom_call.1} parent=11 // pred_region
          _
        $region16: #{tpu_custom_call.1} parent=11 // pred_fallthru
          _
        // Predicated region
        $region17: #{tpu_custom_call.1} parent=11 // pred_check
          %p147 = pneg %p82
        $region18: #{tpu_custom_call.1} parent=11 // pred_check_branch
          %149 = sbr.rel (%p147) target = $region20
        $region19: #{tpu_custom_call.1} parent=11 // pred_region
          _
        $region20: #{tpu_custom_call.1} parent=11 // pred_fallthru
          _
        // Predicated region
        $region21: #{tpu_custom_call.1} parent=11 // pred_check
          %p150 = pneg %p103
        $region22: #{tpu_custom_call.1} parent=11 // pred_check_branch
          %152 = sbr.rel (%p150) target = $region24
        $region23: #{tpu_custom_call.1} parent=11 // pred_region
          _
        $region24: #{tpu_custom_call.1} parent=11 // pred_fallthru
          _
      $region12: #{tpu_custom_call.1} parent=5 // pred_fallthru
        _
      %p153 = scmp.lt.s32.totalorder %s14, 2
      // Predicated region
      $region25: #{tpu_custom_call.1} parent=5 // pred_check
        %p154 = pneg %p153
      $region26: #{tpu_custom_call.1} parent=5 // pred_check_branch
        %156 = sbr.rel (%p154) target = $region28
      $region27: #{tpu_custom_call.1} parent=5 // pred_region
        // Predicated region
        $region29: #{tpu_custom_call.1} parent=27 // pred_check
          %p157 = pneg %p34
        $region30: #{tpu_custom_call.1} parent=27 // pred_check_branch
          %159 = sbr.rel (%p157) target = $region32
        $region31: #{tpu_custom_call.1} parent=27 // pred_region
          %s160 = smul.u32 16, %s14
          %p161 = scmp.lt.s32.totalorder %s160, 31
          %s162 = scalar_select %p161, %s160, 31
          %s163 = smul.addr %s162, 8
          %s164 = scalar_lea.vmem %s0, %s163
          %s165 = smul.u32 16, %s14
        $region32: #{tpu_custom_call.1} parent=27 // pred_fallthru
          _
      $region28: #{tpu_custom_call.1} parent=5 // pred_fallthru
        _
      %p166 = scmp.le.s32.totalorder 1, %s14
      %p167 = scmp.lt.s32.totalorder %s14, 3
      %p168 = pnand %p166, %p167
      %p169 = pneg %p168
      // Predicated region
      $region33: #{tpu_custom_call.1} parent=5 // pred_check
        _
      $region34: #{tpu_custom_call.1} parent=5 // pred_check_branch
        %171 = sbr.rel (%p168) target = $region36
      $region35: #{tpu_custom_call.1} parent=5 // pred_region
        %s172 = ssub.s32 %s14, 1
        %s173 = smul.u32 16, %s19
        %p174 = scmp.lt.s32.totalorder %s173, 31
        %s175 = scalar_select %p174, %s173, 31
        %s176 = smul.addr %s175, 8
        %s177 = scalar_lea.vmem %s0, %s176
        %p178 = pneg %p40
        %p179 = pneg %p37
        %p180 = pneg %p61
        %p181 = pneg %p58
        %p182 = pneg %p82
        %p183 = pneg %p79
        %p184 = pneg %p103
        %p185 = pneg %p100
        %p186 = pneg %p129
        %p187 = pneg %p126
        %s188 = sand.u32 %s116, 1
        %s189 = scalar_lea.sflag [#allocation4], %s188
        %s190 = sand.u32 %s116, 1
        %s191 = scalar_lea.vmem [#allocation3], %s190
        %s192 = smul.u32 16, %s19
        %p193 = scmp.lt.s32.totalorder %s192, 31
        %s194 = scalar_select %p193, %s192, 31
        %s195 = smul.addr %s194, 8
        %s196 = scalar_lea.vmem %s0, %s195
        %s197 = smul.u32 16, %s19
        %v198 = vld [vmem:[%s196] sm:$0xff]
        %v199 = vld [vmem:[%s196 + $0x8] sm:$0xff]
        %v200 = vld [vmem:[%s196 + $0x10] sm:$0xff]
        %v201 = vld [vmem:[%s196 + $0x18] sm:$0xff]
        %v202 = vld [vmem:[%s196 + $0x20] sm:$0xff]
        %v203 = vld [vmem:[%s196 + $0x28] sm:$0xff]
        %v204 = vld [vmem:[%s196 + $0x30] sm:$0xff]
        %v205 = vld [vmem:[%s196 + $0x38] sm:$0xff]
        %v206 = vld [vmem:[%s196 + $0x40] sm:$0xff]
        %v207 = vld [vmem:[%s196 + $0x48] sm:$0xff]
        %v208 = vld [vmem:[%s196 + $0x50] sm:$0xff]
        %v209 = vld [vmem:[%s196 + $0x58] sm:$0xff]
        %v210 = vld [vmem:[%s196 + $0x60] sm:$0xff]
        %v211 = vld [vmem:[%s196 + $0x68] sm:$0xff]
        %v212 = vld [vmem:[%s196 + $0x70] sm:$0xff]
        %v213 = vld [vmem:[%s196 + $0x78] sm:$0xff]
        %v214 = vld [vmem:[%s1] sm:$0xff]
        %v215 = vld [vmem:[%s1 + $0x8] sm:$0xff]
        %v216 = vld [vmem:[%s1 + $0x10] sm:$0xff]
        %v217 = vld [vmem:[%s1 + $0x18] sm:$0xff]
        %v218 = vld [vmem:[%s2] sm:$0x1]
        %v219 = vlaneseq
        %v220 = vshrl.u32 %v219, 7
        %v221 = vsub.s32 0, %v220
        %v222 = vrot.slane %v218, %v221
        %vm223 = vcmask 261120
        %v225 = vsel %vm223, %v198, 0
        %v228 = vsel %vm223, %v199, 0
        %v231 = vsel %vm223, %v200, 0
        %v234 = vsel %vm223, %v201, 0
        %v237 = vsel %vm223, %v202, 0
        %v240 = vsel %vm223, %v203, 0
        %v243 = vsel %vm223, %v204, 0
        %v246 = vsel %vm223, %v205, 0
        %v249 = vsel %vm223, %v206, 0
        %v252 = vsel %vm223, %v207, 0
        %v255 = vsel %vm223, %v208, 0
        %v258 = vsel %vm223, %v209, 0
        %v261 = vsel %vm223, %v210, 0
        %v264 = vsel %vm223, %v211, 0
        %v267 = vsel %vm223, %v212, 0
        %v270 = vsel %vm223, %v213, 0
        %272 = vmatprep.subr.mxu0 0.0
        %273 = vmatpush1.msra.mxu0 %v214
        %274 = vmatprep.subr.mxu0 0.0
        %275 = vmatpush1.msra.mxu0 %v215
        %276 = vmatprep.subr.mxu0 0.0
        %277 = vmatpush1.msra.mxu0 %v216
        %278 = vmatprep.subr.mxu0 0.0
        %279 = vmatpush1.msra.mxu0 %v217
        %280 = vmatprep.subr.mxu0 0.0
        %281 = vmatpush1.msra.mxu0 0.0
        %282 = vmatprep.subr.mxu0 0.0
        %283 = vmatpush1.msra.mxu0 0.0
        %284 = vmatprep.subr.mxu0 0.0
        %285 = vmatpush1.msra.mxu0 0.0
        %286 = vmatprep.subr.mxu0 0.0
        %287 = vmatpush1.msra.mxu0 0.0
        %288 = vmatprep.subr.mxu0 0.0
        %289 = vmatpush1.msra.mxu0 0.0
        %290 = vmatprep.subr.mxu0 0.0
        %291 = vmatpush1.msra.mxu0 0.0
        %292 = vmatprep.subr.mxu0 0.0
        %293 = vmatpush1.msra.mxu0 0.0
        %294 = vmatprep.subr.mxu0 0.0
        %295 = vmatpush1.msra.mxu0 0.0
        %296 = vmatprep.subr.mxu0 0.0
        %297 = vmatpush1.msra.mxu0 0.0
        %298 = vmatprep.subr.mxu0 0.0
        %299 = vmatpush1.msra.mxu0 0.0
        %300 = vmatprep.subr.mxu0 0.0
        %301 = vmatpush1.msra.mxu0 0.0
        %302 = vmatprep.subr.mxu0 0.0
        %303 = vmatpush1.msra.mxu0 0.0
        %304 = vmatprep.subr.mxu0 0.0
        %305 = vmatpush1.msra.mxu0 0.0
        %306 = vmatprep.subr.mxu0 0.0
        %307 = vmatpush1.msra.mxu0 0.0
        %308 = vmatprep.subr.mxu0 0.0
        %309 = vmatpush1.msra.mxu0 0.0
        %310 = vmatprep.subr.mxu0 0.0
        %311 = vmatpush1.msra.mxu0 0.0
        %312 = vmatprep.subr.mxu0 0.0
        %313 = vmatpush1.msra.mxu0 0.0
        %314 = vmatprep.subr.mxu0 0.0
        %315 = vmatpush1.msra.mxu0 0.0
        %316 = vmatprep.subr.mxu0 0.0
        %317 = vmatpush1.msra.mxu0 0.0
        %318 = vmatprep.subr.mxu0 0.0
        %319 = vmatpush1.msra.mxu0 0.0
        %320 = vmatprep.subr.mxu0 0.0
        %321 = vmatpush1.msra.mxu0 0.0
        %322 = vmatprep.subr.mxu0 0.0
        %323 = vmatpush1.msra.mxu0 0.0
        %324 = vmatprep.subr.mxu0 0.0
        %325 = vmatpush1.msra.mxu0 0.0
        %326 = vmatprep.subr.mxu0 0.0
        %327 = vmatpush1.msra.mxu0 0.0
        %328 = vmatprep.subr.mxu0 0.0
        %329 = vmatpush1.msra.mxu0 0.0
        %330 = vmatprep.subr.mxu0 0.0
        %331 = vmatpush1.msra.mxu0 0.0
        %332 = vmatprep.subr.mxu0 0.0
        %333 = vmatpush1.msra.mxu0 0.0
        %334 = vmatprep.subr.mxu0 0.0
        %335 = vmatpush1.msra.mxu0 0.0
        %336 = vmatprep.mubr.f32.mxu0 0.0
        %337 = vmatmul.mubr.f32.gmra.mrb[0].mxu0 %v225
        %v338 = vpop.f32.mrb[0].mxu0
        %v339 = vadd.f32 %v222, %v338
        %v340 = vpop.f32.mrb[0].mxu0
        %341 = vmatprep.mubr.f32.mxu0 0.0
        %342 = vmatmul.mubr.f32.gmra.mrb[0].mxu0 %v228
        %v343 = vpop.f32.mrb[0].mxu0
        %v344 = vadd.f32 %v222, %v343
        %v345 = vpop.f32.mrb[0].mxu0
        %346 = vmatprep.mubr.f32.mxu0 0.0
        %347 = vmatmul.mubr.f32.gmra.mrb[0].mxu0 %v231
        %v348 = vpop.f32.mrb[0].mxu0
        %v349 = vadd.f32 %v222, %v348
        %v350 = vpop.f32.mrb[0].mxu0
        %351 = vmatprep.mubr.f32.mxu0 0.0
        %352 = vmatmul.mubr.f32.gmra.mrb[0].mxu0 %v234
        %v353 = vpop.f32.mrb[0].mxu0
        %v354 = vadd.f32 %v222, %v353
        %v355 = vpop.f32.mrb[0].mxu0
        %356 = vmatprep.mubr.f32.mxu0 0.0
        %357 = vmatmul.mubr.f32.gmra.mrb[0].mxu0 %v237
        %v358 = vpop.f32.mrb[0].mxu0
        %v359 = vadd.f32 %v222, %v358
        %v360 = vpop.f32.mrb[0].mxu0
        %361 = vmatprep.mubr.f32.mxu0 0.0
        %362 = vmatmul.mubr.f32.gmra.mrb[0].mxu0 %v240
        %v363 = vpop.f32.mrb[0].mxu0
        %v364 = vadd.f32 %v222, %v363
        %v365 = vpop.f32.mrb[0].mxu0
        %366 = vmatprep.mubr.f32.mxu0 0.0
        %367 = vmatmul.mubr.f32.gmra.mrb[0].mxu0 %v243
        %v368 = vpop.f32.mrb[0].mxu0
        %v369 = vadd.f32 %v222, %v368
        %v370 = vpop.f32.mrb[0].mxu0
        %371 = vmatprep.mubr.f32.mxu0 0.0
        %372 = vmatmul.mubr.f32.gmra.mrb[0].mxu0 %v246
        %v373 = vpop.f32.mrb[0].mxu0
        %v374 = vadd.f32 %v222, %v373
        %v375 = vpop.f32.mrb[0].mxu0
        %376 = vmatprep.mubr.f32.mxu0 0.0
        %377 = vmatmul.mubr.f32.gmra.mrb[0].mxu0 %v249
        %v378 = vpop.f32.mrb[0].mxu0
        %v379 = vadd.f32 %v222, %v378
        %v380 = vpop.f32.mrb[0].mxu0
        %381 = vmatprep.mubr.f32.mxu0 0.0
        %382 = vmatmul.mubr.f32.gmra.mrb[0].mxu0 %v252
        %v383 = vpop.f32.mrb[0].mxu0
        %v384 = vadd.f32 %v222, %v383
        %v385 = vpop.f32.mrb[0].mxu0
        %386 = vmatprep.mubr.f32.mxu0 0.0
        %387 = vmatmul.mubr.f32.gmra.mrb[0].mxu0 %v255
        %v388 = vpop.f32.mrb[0].mxu0
        %v389 = vadd.f32 %v222, %v388
        %v390 = vpop.f32.mrb[0].mxu0
        %391 = vmatprep.mubr.f32.mxu0 0.0
        %392 = vmatmul.mubr.f32.gmra.mrb[0].mxu0 %v258
        %v393 = vpop.f32.mrb[0].mxu0
        %v394 = vadd.f32 %v222, %v393
        %v395 = vpop.f32.mrb[0].mxu0
        %396 = vmatprep.mubr.f32.mxu0 0.0
        %397 = vmatmul.mubr.f32.gmra.mrb[0].mxu0 %v261
        %v398 = vpop.f32.mrb[0].mxu0
        %v399 = vadd.f32 %v222, %v398
        %v400 = vpop.f32.mrb[0].mxu0
        %401 = vmatprep.mubr.f32.mxu0 0.0
        %402 = vmatmul.mubr.f32.gmra.mrb[0].mxu0 %v264
        %v403 = vpop.f32.mrb[0].mxu0
        %v404 = vadd.f32 %v222, %v403
        %v405 = vpop.f32.mrb[0].mxu0
        %406 = vmatprep.mubr.f32.mxu0 0.0
        %407 = vmatmul.mubr.f32.gmra.mrb[0].mxu0 %v267
        %v408 = vpop.f32.mrb[0].mxu0
        %v409 = vadd.f32 %v222, %v408
        %v410 = vpop.f32.mrb[0].mxu0
        %411 = vmatprep.mubr.f32.mxu0 0.0
        %412 = vmatmul.mubr.f32.gmra.mrb[0].mxu0 %v270
        %v413 = vpop.f32.mrb[0].mxu0
        %v414 = vadd.f32 %v222, %v413
        %v415 = vpop.f32.mrb[0].mxu0
        %416 = vdwg.mxu0
        %v417 = vmax.f32 %v339, 0.0
        %v418 = vmax.f32 %v344, 0.0
        %v419 = vmax.f32 %v349, 0.0
        %v420 = vmax.f32 %v354, 0.0
        %v421 = vmax.f32 %v359, 0.0
        %v422 = vmax.f32 %v364, 0.0
        %v423 = vmax.f32 %v369, 0.0
        %v424 = vmax.f32 %v374, 0.0
        %v425 = vmax.f32 %v379, 0.0
        %v426 = vmax.f32 %v384, 0.0
        %v427 = vmax.f32 %v389, 0.0
        %v428 = vmax.f32 %v394, 0.0
        %v429 = vmax.f32 %v399, 0.0
        %v430 = vmax.f32 %v404, 0.0
        %v431 = vmax.f32 %v409, 0.0
        %v432 = vmax.f32 %v414, 0.0
        %v433 = vld [vmem:[%s2 + $0x1] sm:$0x1]
        %s434 = sld [smem:[#allocation2]]
        %v435 = vstv %s434
        %vm436 = vcmask 130048
        %v438 = vsel %vm436, %v433, 0
        %v441 = vsel %vm436, %v417, 0
        %v444 = vsel %vm436, %v418, 0
        %v447 = vsel %vm436, %v419, 0
        %v450 = vsel %vm436, %v420, 0
        %v453 = vsel %vm436, %v421, 0
        %v456 = vsel %vm436, %v422, 0
        %v459 = vsel %vm436, %v423, 0
        %v462 = vsel %vm436, %v424, 0
        %v465 = vsel %vm436, %v425, 0
        %v468 = vsel %vm436, %v426, 0
        %v471 = vsel %vm436, %v427, 0
        %v474 = vsel %vm436, %v428, 0
        %v477 = vsel %vm436, %v429, 0
        %v480 = vsel %vm436, %v430, 0
        %v483 = vsel %vm436, %v431, 0
        %v486 = vsel %vm436, %v432, 0
        %488 = vmatprep.subr.mxu0 0.0
        %489 = vmatpush1.xpose.msra.mxu0 %v441
        %490 = vmatprep.subr.mxu0 0.0
        %491 = vmatpush1.xpose.msra.mxu0 %v444
        %492 = vmatprep.subr.mxu0 0.0
        %493 = vmatpush1.xpose.msra.mxu0 %v447
        %494 = vmatprep.subr.mxu0 0.0
        %495 = vmatpush1.xpose.msra.mxu0 %v450
        %496 = vmatprep.subr.mxu0 0.0
        %497 = vmatpush1.xpose.msra.mxu0 %v453
        %498 = vmatprep.subr.mxu0 0.0
        %499 = vmatpush1.xpose.msra.mxu0 %v456
        %500 = vmatprep.subr.mxu0 0.0
        %501 = vmatpush1.xpose.msra.mxu0 %v459
        %502 = vmatprep.subr.mxu0 0.0
        %503 = vmatpush1.xpose.msra.mxu0 %v462
        %504 = vmatprep.subr.mxu0 0.0
        %505 = vmatpush1.xpose.msra.mxu0 %v465
        %506 = vmatprep.subr.mxu0 0.0
        %507 = vmatpush1.xpose.msra.mxu0 %v468
        %508 = vmatprep.subr.mxu0 0.0
        %509 = vmatpush1.xpose.msra.mxu0 %v471
        %510 = vmatprep.subr.mxu0 0.0
        %511 = vmatpush1.xpose.msra.mxu0 %v474
        %512 = vmatprep.subr.mxu0 0.0
        %513 = vmatpush1.xpose.msra.mxu0 %v477
        %514 = vmatprep.subr.mxu0 0.0
        %515 = vmatpush1.xpose.msra.mxu0 %v480
        %516 = vmatprep.subr.mxu0 0.0
        %517 = vmatpush1.xpose.msra.mxu0 %v483
        %518 = vmatprep.subr.mxu0 0.0
        %519 = vmatpush1.xpose.msra.mxu0 %v486
        %520 = vmatprep.subr.mxu0 0.0
        %521 = vmatpush1.xpose.msra.mxu0 0.0
        %522 = vmatprep.subr.mxu0 0.0
        %523 = vmatpush1.xpose.msra.mxu0 0.0
        %524 = vmatprep.subr.mxu0 0.0
        %525 = vmatpush1.xpose.msra.mxu0 0.0
        %526 = vmatprep.subr.mxu0 0.0
        %527 = vmatpush1.xpose.msra.mxu0 0.0
        %528 = vmatprep.subr.mxu0 0.0
        %529 = vmatpush1.xpose.msra.mxu0 0.0
        %530 = vmatprep.subr.mxu0 0.0
        %531 = vmatpush1.xpose.msra.mxu0 0.0
        %532 = vmatprep.subr.mxu0 0.0
        %533 = vmatpush1.xpose.msra.mxu0 0.0
        %534 = vmatprep.subr.mxu0 0.0
        %535 = vmatpush1.xpose.msra.mxu0 0.0
        %536 = vmatprep.subr.mxu0 0.0
        %537 = vmatpush1.xpose.msra.mxu0 0.0
        %538 = vmatprep.subr.mxu0 0.0
        %539 = vmatpush1.xpose.msra.mxu0 0.0
        %540 = vmatprep.subr.mxu0 0.0
        %541 = vmatpush1.xpose.msra.mxu0 0.0
        %542 = vmatprep.subr.mxu0 0.0
        %543 = vmatpush1.xpose.msra.mxu0 0.0
        %544 = vmatprep.subr.mxu0 0.0
        %545 = vmatpush1.xpose.msra.mxu0 0.0
        %546 = vmatprep.subr.mxu0 0.0
        %547 = vmatpush1.xpose.msra.mxu0 0.0
        %548 = vmatprep.subr.mxu0 0.0
        %549 = vmatpush1.xpose.msra.mxu0 0.0
        %550 = vmatprep.subr.mxu0 0.0
        %551 = vmatpush1.xpose.msra.mxu0 0.0
        %552 = vmatprep.mubr.f32.mxu0 0.0
        %553 = vmatmul.mubr.f32.gmra.mrb[0].mxu0 %v438
        %v554 = vpop.f32.mrb[0].mxu0
        %v555 = vadd.f32 %v435, %v554
        %v556 = vpop.f32.mrb[0].mxu0
        %557 = vdwg.mxu0
        %v558 = vxor.u32 %v555, 2147483648
        %v559 = vmul.f32 %v558, 1.442695
        %v560 = vpow.pop %v559
        %v561 = vadd.f32 %v560, 1.0
        %v562 = vrcp.pop %v561
        %v563 = vmul.f32 1.0, %v562
        %564 = vst [vmem:[%s191] sm:$0x1] %v563
        %s565 = sand.u32 %s116, 1
        %s566 = scalar_lea.sflag [#allocation4], %s565
        %s567 = sand.u32 %s116, 1
        %s568 = scalar_lea.vmem [#allocation3], %s567
        // Predicated region
        $region37: #{tpu_custom_call.1} parent=35 // pred_check
          %p569 = pneg %p126
        $region38: #{tpu_custom_call.1} parent=35 // pred_check_branch
          %571 = sbr.rel (%p569) target = $region40
        $region39: #{tpu_custom_call.1} parent=35 // pred_region
          %s573 = ssub.s32 16, 16
          %574 = vsyncadd %s566, %s573
          %s575 = smul.addr %s19, 16
          %s576 = scalar_lea.hbm %s4, %s575
          %s578 = sshll.u32 %s568, 4
          %s579 = int_to_ptr.vmem [resolvable:$true] %s578
          %581 = dma.vmem_to_hbm [thread:$0]  %s579, 16, %s576, %s566
        $region40: #{tpu_custom_call.1} parent=35 // pred_fallthru
          _
      $region36: #{tpu_custom_call.1} parent=5 // pred_fallthru
        _
      %p582 = scmp.le.s32.totalorder 2, %s14
      // Predicated region
      $region41: #{tpu_custom_call.1} parent=5 // pred_check
        %p583 = pneg %p582
      $region42: #{tpu_custom_call.1} parent=5 // pred_check_branch
        %585 = sbr.rel (%p583) target = $region44
      $region43: #{tpu_custom_call.1} parent=5 // pred_region
        %s586 = ssub.s32 %s14, 2
        // Predicated region
        $region45: #{tpu_custom_call.1} parent=43 // pred_check
          %p587 = pneg %p132
        $region46: #{tpu_custom_call.1} parent=43 // pred_check_branch
          %589 = sbr.rel (%p587) target = $region48
        $region47: #{tpu_custom_call.1} parent=43 // pred_region
          %s590 = sand.u32 %s117, 1
          %s591 = scalar_lea.sflag [#allocation4], %s590
          %s592 = sand.u32 %s117, 1
          %s593 = scalar_lea.vmem [#allocation3], %s592
          %594 = dma.done %s591, 16
        $region48: #{tpu_custom_call.1} parent=43 // pred_fallthru
          _
      $region44: #{tpu_custom_call.1} parent=5 // pred_fallthru
        _
    $region6: #{tpu_custom_call.1} parent=1 // loop_footer
      %s18 = sadd.s32 1, %s14
    $region7: #{tpu_custom_call.1} parent=1 // loop_footer_branch
      %13 = sbr.rel target = $region3
    $region8: #{tpu_custom_call.1} parent=1 // loop_exit
      _
    %595 = vsyncpa [#allocation4], 1
    %s596 = scalar_lea.sflag [#allocation4], 1
    %597 = vsyncpa %s596, 1

</llo_original>
